<compile_context>
chip_gen: v5e
topology: v5e:2x2
jax: 0.10.0
libtpu: 0.0.40
codegen_flags: <defaults>
</compile_context>

<pallas_src>
import functools

import jax
import jax.numpy as jnp
from jax.experimental import pallas as pl
from jax.experimental.pallas import tpu as pltpu


def _kernel_resident_xa(xa_ref, b_ref, o_ref, *, tile_m):
    # xa_ref: (M_pad, R)   whole low-rank projection, VMEM-resident (DMA'd once)
    # b_ref : (R, tile_n)  one vocab tile of B
    # o_ref : (tile_m, tile_n)
    row0 = pl.multiple_of(pl.program_id(1) * tile_m, tile_m)
    xa = xa_ref[pl.ds(row0, tile_m), :]
    o_ref[...] = jnp.dot(
        xa, b_ref[...], preferred_element_type=jnp.float32
    ).astype(o_ref.dtype)


def _kernel_tiled_xa(xa_ref, b_ref, o_ref):
    # Fallback when (M, R) is too large to keep resident: xa is tiled by BlockSpec.
    o_ref[...] = jnp.dot(
        xa_ref[...], b_ref[...], preferred_element_type=jnp.float32
    ).astype(o_ref.dtype)


def ada_vocab_head(x, A, B, *, tile_m=256, tile_n=2048,
                   compute_dtype=jnp.float32, out_dtype=None,
                   xa_resident_budget_bytes=8 << 20):
    """logits = x @ A @ B.

    x: (batch, seq, hidden); A: (hidden, R); B: (R, vocab) -> (batch, seq, vocab).
    Pass out_dtype=jnp.bfloat16 (and compute_dtype=jnp.bfloat16 with a
    pre-converted B) to halve the HBM-writeback-bound traffic.
    """
    batch, seq, hidden = x.shape
    sub_dim, vocab = B.shape
    assert A.shape == (hidden, sub_dim)

    if out_dtype is None:
        out_dtype = x.dtype

    M = batch * seq
    x2d = x.reshape(M, hidden)

    # Hoist x @ A out of the vocab grid loop (identical for every vocab tile).
    xa = jnp.dot(x2d, A, preferred_element_type=jnp.float32).astype(compute_dtype)
    # B is a weight: in real use convert it to compute_dtype once and cache it.
    Bc = B if B.dtype == jnp.dtype(compute_dtype) else B.astype(compute_dtype)

    # Tile sizes: clamp to the full dim when the array is smaller than the tile
    # (a block equal to the full dim is always layout-legal); otherwise keep the
    # (8, 128)-aligned tile and let Pallas mask the non-divisible edge blocks.
    tile_m_eff = tile_m if M > tile_m else M
    tile_n_eff = tile_n if vocab > tile_n else vocab

    n_row = pl.cdiv(M, tile_m_eff)
    n_voc = pl.cdiv(vocab, tile_n_eff)
    M_pad = n_row * tile_m_eff

    cd_bytes = jnp.dtype(compute_dtype).itemsize
    ob_bytes = jnp.dtype(out_dtype).itemsize

    # Keep the whole x@A projection VMEM-resident when it is small (typical):
    # removes one DMA per grid step and all xa HBM re-reads.
    xa_bytes = M_pad * sub_dim * cd_bytes
    resident = xa_bytes <= xa_resident_budget_bytes

    if resident:
        if M_pad != M:
            # Tiny (M x R) pad so in-kernel pl.ds slices never leave the buffer.
            xa = jnp.pad(xa, ((0, M_pad - M), (0, 0)))
        xa_spec = pl.BlockSpec((M_pad, sub_dim), lambda j, i: (0, 0))
        kernel = functools.partial(_kernel_resident_xa, tile_m=tile_m_eff)
        xa_read_bytes = xa_bytes
    else:
        xa_spec = pl.BlockSpec((tile_m_eff, sub_dim), lambda j, i: (i, 0))
        kernel = _kernel_tiled_xa
        xa_read_bytes = n_voc * M * sub_dim * cd_bytes

    grid = (n_voc, n_row)  # vocab outer (B fetched once per tile), rows inner

    # Double-buffered VMEM footprint + headroom; cap below v7x's 64 MiB physical
    # VMEM so Mosaic keeps room for its own scratch.
    vmem_needed = ((xa_bytes if resident else 2 * tile_m_eff * sub_dim * cd_bytes)
                   + 2 * sub_dim * tile_n_eff * cd_bytes
                   + 2 * tile_m_eff * tile_n_eff * ob_bytes)
    vmem_limit = int(min(max(vmem_needed + (4 << 20), 32 << 20), 56 << 20))

    cost = pl.CostEstimate(
        flops=2 * M * sub_dim * vocab,
        transcendentals=0,
        bytes_accessed=(M * vocab * ob_bytes          # output writeback (dominant)
                        + sub_dim * vocab * cd_bytes  # B read once
                        + xa_read_bytes),             # xa read(s)
    )

    out2d = pl.pallas_call(
        kernel,
        out_shape=jax.ShapeDtypeStruct((M, vocab), out_dtype),
        grid=grid,
        in_specs=[
            xa_spec,
            # B: lane-dense vocab tiles, block index invariant across row axis.
            pl.BlockSpec((sub_dim, tile_n_eff), lambda j, i: (0, j)),
        ],
        out_specs=pl.BlockSpec((tile_m_eff, tile_n_eff), lambda j, i: (i, j)),
        compiler_params=pltpu.CompilerParams(
            dimension_semantics=("parallel", "parallel"),  # v7x: shard across 2 TCs
            vmem_limit_bytes=vmem_limit,
        ),
        cost_estimate=cost,
    )(xa, Bc)

    return out2d.reshape(batch, seq, vocab)


if __name__ == "__main__":
    # Small shapes consistent with the module's forward.
    batch, seq, hidden = 2, 8, 32
    sub_vocab_dim, vocab_size = 16, 256

    key = jax.random.PRNGKey(0)
    kx, ka, kb = jax.random.split(key, 3)

    std_dev = 1.0 / jnp.sqrt(jnp.float32(sub_vocab_dim))
    A = jax.random.normal(ka, (hidden, sub_vocab_dim), dtype=jnp.float32) * std_dev
    # NOTE: the PyTorch module initializes B to zeros; use a random B here so the
    # correctness check actually exercises the second matmul.
    B = jax.random.normal(kb, (sub_vocab_dim, vocab_size), dtype=jnp.float32) * std_dev
    x = jax.random.normal(kx, (batch, seq, hidden), dtype=jnp.float32)

    ref = jnp.dot(jnp.dot(x, A, precision=jax.lax.Precision.HIGHEST), B,
                  precision=jax.lax.Precision.HIGHEST)

    # Full-f32 path (matches original module semantics).
    out = jax.block_until_ready(ada_vocab_head(x, A, B))
    assert out.shape == (batch, seq, vocab_size)
    assert out.dtype == jnp.float32
    assert jnp.allclose(out, ref, atol=1e-2, rtol=1e-2)

    # bf16 streaming + bf16 logits writeback (halves the dominant HBM traffic);
    # B is pre-converted once, as a cached weight would be.
    B_bf16 = B.astype(jnp.bfloat16)
    out_bf16 = jax.block_until_ready(
        ada_vocab_head(x, A, B_bf16,
                       compute_dtype=jnp.bfloat16, out_dtype=jnp.bfloat16))
    assert out_bf16.shape == (batch, seq, vocab_size)
    assert out_bf16.dtype == jnp.bfloat16
    assert jnp.allclose(out_bf16.astype(jnp.float32), ref, atol=1e-1, rtol=5e-2)

    print("KERNEL_OK")
</pallas_src>

<mosaic_0001>
module attributes {stable_mosaic.version = 11 : i64} {
  func.func @_kernel_resident_xa(%arg0: i32, %arg1: i32, %arg2: memref<16x16xf32, #tpu.memory_space<vmem>>, %arg3: memref<16x256xf32, #tpu.memory_space<vmem>>, %arg4: memref<16x256xf32, #tpu.memory_space<vmem>>) attributes {dimension_semantics = [#tpu.dimension_semantics<parallel>, #tpu.dimension_semantics<parallel>], iteration_bounds = array<i64: 1, 1>, scalar_prefetch = 0 : i64, scratch_operands = 0 : i64, tpu.core_type = #tpu.core_type<tc>, window_params = [{pipeline_mode = #tpu.pipeline_mode<synchronous>, transform_indices = @transform_0, window_bounds = array<i64: 16, 16>}, {transform_indices = @transform_1, window_bounds = array<i64: 16, 256>}, {transform_indices = @transform_2, window_bounds = array<i64: 16, 256>}]} {
    %c16_i32 = arith.constant 16 : i32
    %0 = arith.muli %arg1, %c16_i32 : i32
    %1 = tpu.assume_multiple %0, 16 : i32
    %2 = arith.index_cast %1 : i32 to index
    %c0 = arith.constant 0 : index
    %3 = vector.load %arg2[%2, %c0] : memref<16x16xf32, #tpu.memory_space<vmem>>, vector<16x16xf32>
    %c0_0 = arith.constant 0 : index
    %c0_1 = arith.constant 0 : index
    %4 = vector.load %arg3[%c0_0, %c0_1] : memref<16x256xf32, #tpu.memory_space<vmem>>, vector<16x256xf32>
    %cst = arith.constant dense<0.000000e+00> : vector<16x256xf32>
    %5 = tpu.matmul %3, %4, %cst {dimension_numbers = #tpu.dot_dimension_numbers<[1], [0], [0], [1], [0, 0, 1, 1], [], []>} : vector<16x16xf32>, vector<16x256xf32>, vector<16x256xf32> -> vector<16x256xf32>
    %c0_2 = arith.constant 0 : index
    %c0_3 = arith.constant 0 : index
    %6 = vector.load %arg4[%c0_2, %c0_3] : memref<16x256xf32, #tpu.memory_space<vmem>>, vector<16x256xf32>
    tpu.vector_store %arg4[%c0_2, %c0_3], %5 {strides = array<i32>} : memref<16x256xf32, #tpu.memory_space<vmem>>, vector<16x256xf32>,
    return
  }
  func.func @transform_0(%arg0: i32, %arg1: i32) -> (i32, i32) {
    %c0_i32 = arith.constant 0 : i32
    %c0_i32_0 = arith.constant 0 : i32
    %c0_i32_1 = arith.constant 0 : i32
    return %c0_i32, %c0_i32_0 : i32, i32
  }
  func.func @transform_1(%arg0: i32, %arg1: i32) -> (i32, i32) {
    %c0_i32 = arith.constant 0 : i32
    %c0_i32_0 = arith.constant 0 : i32
    return %c0_i32, %arg0 : i32, i32
  }
  func.func @transform_2(%arg0: i32, %arg1: i32) -> (i32, i32) {
    %c0_i32 = arith.constant 0 : i32
    return %arg1, %arg0 : i32, i32
  }
}

</mosaic_0001>

<llo_original>
// kernel: tpu_custom_call.1
$region0: #{tpu_custom_call.1}
  #allocation0 [shape = 'u32[]', space=smem, size = 0x4, offset = 0x4, fixed_abs, tag = 'smem constant byte address 0x4 - core index']
  #allocation1 [shape = 'u32[72,128]{1,0:T(1,128)}', space=vmem, size = 0x9000, scoped, tag = 'internal scratch']
  %s0 = inlined_call_operand.hbm [shape: f32[16,16], index: 0, kind: input, shape index: {}]
  %s1 = inlined_call_operand.hbm [shape: f32[16,256], index: 1, kind: input, shape index: {}]
  %s2 = inlined_call_operand.hbm [shape: f32[16,256], index: 2, kind: output, shape index: {}]
  %s3 = sld [smem:[#allocation0]]
  $region26: #{tpu_custom_call.1} parent=0
    _
  %s5 = ssub.s32 1, %s3
  %s6 = scalar_select 0, %s5, %s3
  $region1: #{tpu_custom_call.1} parent=0
    #allocation2 [shape = 'u8[8192]{0}', space=vmem, size = 0x2000, scoped, tag = 'input window, operand 0, single buffered']
    #allocation3 [shape = 's32[1]{0}', space=sflag, size = 0x4, scoped, tag = 'scoped memory for tpu_custom_call.1']
    #allocation4 [shape = 's32[1]{0}', space=sflag, size = 0x4, scoped, tag = 'scoped memory for tpu_custom_call.1']
    #allocation5 [shape = 'u8[16384]{0}', space=vmem, size = 0x4000, scoped, tag = 'input window, operand 1, single buffered']
    #allocation6 [shape = 's32[1]{0}', space=sflag, size = 0x4, scoped, tag = 'scoped memory for tpu_custom_call.1']
    #allocation7 [shape = 'u8[16384]{0}', space=vmem, size = 0x4000, scoped, tag = 'output window, operand 0, single buffered']
    %7 = vsyncpa [#allocation3], 0
    %8 = vsyncpa [#allocation6], 0
    %9 = vsyncpa [#allocation4], 0
    // Predicated region
    $region2: #{tpu_custom_call.1} parent=1 // pred_check
      _
    $region3: #{tpu_custom_call.1} parent=1 // pred_check_branch
      %11 = sbr.rel (0) target = $region5
    $region4: #{tpu_custom_call.1} parent=1 // pred_region
      %13 = vsyncadd [#allocation3], 0
      %s14 = sshll.u32 %s0, 4
      %s15 = int_to_ptr.hbm [resolvable:$true] %s14
      %s16 = sshll.u32 [#allocation2], 4
      %s17 = int_to_ptr.vmem [resolvable:$true] %s16
      %22 = dma.hbm_to_vmem [thread:$0]  %s15, 256, %s17, [#allocation3], 128, 128, 8
    $region5: #{tpu_custom_call.1} parent=1 // pred_fallthru
      _
    // Predicated region
    $region6: #{tpu_custom_call.1} parent=1 // pred_check
      _
    $region7: #{tpu_custom_call.1} parent=1 // pred_check_branch
      %24 = sbr.rel (0) target = $region9
    $region8: #{tpu_custom_call.1} parent=1 // pred_region
      %26 = vsyncadd [#allocation6], 0
      %s27 = sshll.u32 %s1, 4
      %s28 = int_to_ptr.hbm [resolvable:$true] %s27
      %s29 = sshll.u32 [#allocation5], 4
      %s30 = int_to_ptr.vmem [resolvable:$true] %s29
      %35 = dma.hbm_to_vmem [thread:$0]  %s28, 512, %s30, [#allocation6], 256, 256, 16
    $region9: #{tpu_custom_call.1} parent=1 // pred_fallthru
      _
    // Predicated region
    $region10: #{tpu_custom_call.1} parent=1 // pred_check
      _
    $region11: #{tpu_custom_call.1} parent=1 // pred_check_branch
      %37 = sbr.rel (0) target = $region13
    $region12: #{tpu_custom_call.1} parent=1 // pred_region
      %39 = dma.done [#allocation3], 256
    $region13: #{tpu_custom_call.1} parent=1 // pred_fallthru
      _
    // Predicated region
    $region14: #{tpu_custom_call.1} parent=1 // pred_check
      _
    $region15: #{tpu_custom_call.1} parent=1 // pred_check_branch
      %41 = sbr.rel (0) target = $region17
    $region16: #{tpu_custom_call.1} parent=1 // pred_region
      %43 = dma.done [#allocation6], 512
    $region17: #{tpu_custom_call.1} parent=1 // pred_fallthru
      _
    %s44 = smul.u32 0, 16
    %s45 = scalar_lea.vmem [#allocation2], %s44
    %v46 = vld [vmem:[%s45] sm:$0xff]
    %v47 = vld [vmem:[%s45 + $0x8] sm:$0xff]
    %v48 = vld [vmem:[#allocation5] sm:$0xff]
    %v49 = vld [vmem:[#allocation5 + $0x8] sm:$0xff]
    %v50 = vld [vmem:[#allocation5 + $0x10] sm:$0xff]
    %v51 = vld [vmem:[#allocation5 + $0x18] sm:$0xff]
    %vm52 = vcmask 130048
    %v54 = vsel %vm52, %v46, 0
    %v57 = vsel %vm52, %v47, 0
    %59 = vmatpush.msra.mxu0 0.0
    %60 = vmatpush.msra.mxu0 0.0
    %61 = vmatpush.msra.mxu0 0.0
    %62 = vmatpush.msra.mxu0 0.0
    %63 = vmatpush.msra.mxu0 0.0
    %64 = vmatpush.msra.mxu0 0.0
    %65 = vmatpush.msra.mxu0 0.0
    %66 = vmatpush.msra.mxu0 0.0
    %67 = vmatpush.msra.mxu0 0.0
    %68 = vmatpush.msra.mxu0 0.0
    %69 = vmatpush.msra.mxu0 0.0
    %70 = vmatpush.msra.mxu0 0.0
    %71 = vmatpush.msra.mxu0 0.0
    %72 = vmatpush.msra.mxu0 0.0
    %73 = vmatpush.msra.mxu0 %v50
    %74 = vmatpush.msra.mxu0 %v48
    %75 = vmatmul.f32.gmra.mxu0 %v54
    %v76 = vpop.f32.mrf.mxu0
    %v77 = vadd.f32 0.0, %v76
    %78 = vmatmul.f32.gmra.mxu0 %v57
    %v79 = vpop.f32.mrf.mxu0
    %v80 = vadd.f32 0.0, %v79
    %81 = vdwg.mxu0
    %82 = vmatpush.msra.mxu0 0.0
    %83 = vmatpush.msra.mxu0 0.0
    %84 = vmatpush.msra.mxu0 0.0
    %85 = vmatpush.msra.mxu0 0.0
    %86 = vmatpush.msra.mxu0 0.0
    %87 = vmatpush.msra.mxu0 0.0
    %88 = vmatpush.msra.mxu0 0.0
    %89 = vmatpush.msra.mxu0 0.0
    %90 = vmatpush.msra.mxu0 0.0
    %91 = vmatpush.msra.mxu0 0.0
    %92 = vmatpush.msra.mxu0 0.0
    %93 = vmatpush.msra.mxu0 0.0
    %94 = vmatpush.msra.mxu0 0.0
    %95 = vmatpush.msra.mxu0 0.0
    %96 = vmatpush.msra.mxu0 %v51
    %97 = vmatpush.msra.mxu0 %v49
    %98 = vmatmul.f32.gmra.mxu0 %v54
    %v99 = vpop.f32.mrf.mxu0
    %v100 = vadd.f32 0.0, %v99
    %101 = vmatmul.f32.gmra.mxu0 %v57
    %v102 = vpop.f32.mrf.mxu0
    %v103 = vadd.f32 0.0, %v102
    %104 = vdwg.mxu0
    %105 = vst [vmem:[#allocation7] sm:$0xff] %v77
    %106 = vst [vmem:[#allocation7 + $0x8] sm:$0xff] %v100
    %107 = vst [vmem:[#allocation7 + $0x10] sm:$0xff] %v80
    %108 = vst [vmem:[#allocation7 + $0x18] sm:$0xff] %v103
    // Predicated region
    $region18: #{tpu_custom_call.1} parent=1 // pred_check
      _
    $region19: #{tpu_custom_call.1} parent=1 // pred_check_branch
      %110 = sbr.rel (0) target = $region21
    $region20: #{tpu_custom_call.1} parent=1 // pred_region
      %112 = vsyncadd [#allocation4], 0
      %s113 = sshll.u32 [#allocation7], 4
      %s114 = int_to_ptr.vmem [resolvable:$true] %s113
      %s115 = sshll.u32 %s2, 4
      %s116 = int_to_ptr.hbm [resolvable:$true] %s115
      %121 = dma.vmem_to_hbm [thread:$0]  %s114, 512, %s116, [#allocation4], 256, 256, 16
    $region21: #{tpu_custom_call.1} parent=1 // pred_fallthru
      _
    // Predicated region
    $region22: #{tpu_custom_call.1} parent=1 // pred_check
      _
    $region23: #{tpu_custom_call.1} parent=1 // pred_check_branch
      %123 = sbr.rel (0) target = $region25
    $region24: #{tpu_custom_call.1} parent=1 // pred_region
      %125 = dma.done [#allocation4], 512
    $region25: #{tpu_custom_call.1} parent=1 // pred_fallthru
      _
    %126 = vsyncpa [#allocation3], 1
    %127 = vsyncpa [#allocation6], 1
    %128 = vsyncpa [#allocation4], 1

</llo_original>
